<compile_context>
chip_gen: v6e
topology: v6e:2x2x1
jax: 0.10.0
libtpu: 0.0.40
codegen_flags: <defaults>
</compile_context>

<pallas_src>
import jax
import jax.numpy as jnp
from jax.experimental import pallas as pl
from jax.experimental.pallas import tpu as pltpu


HIDDEN1 = 128
HIDDEN2 = 64
LANE = 128


def _round_up(x, m):
    return (x + m - 1) // m * m


def _mlp_kernel(x_ref, w1_ref, b1_ref, w2_ref, b2_ref, w3_ref, b3_ref, o_ref):
    # In-kernel bf16 cast of the activations (no extra HBM pass in the wrapper).
    x = x_ref[...].astype(jnp.bfloat16)

    b1 = b1_ref[...]
    b2 = b2_ref[...]
    b3 = b3_ref[...]

    # fc1 + ReLU  (bf16 MXU inputs, f32 accumulation)
    h1 = jnp.dot(x, w1_ref[...], preferred_element_type=jnp.float32)
    h1 = jnp.maximum(h1 + b1, 0.0).astype(jnp.bfloat16)

    # fc2 + ReLU  (hidden2 zero-padded to 128 lanes; padded lanes stay exactly 0)
    h2 = jnp.dot(h1, w2_ref[...], preferred_element_type=jnp.float32)
    h2 = jnp.maximum(h2 + b2, 0.0).astype(jnp.bfloat16)

    # final_layer (no activation); matmul is 128-lane dense, but only the real
    # out_dim lanes are stored to HBM (masked vst on the narrow output block).
    out = jnp.dot(h2, w3_ref[...], preferred_element_type=jnp.float32) + b3
    o_ref[...] = out[:, : o_ref.shape[-1]].astype(o_ref.dtype)


def _pack_params(params):
    """Cast weights to bf16 and zero-pad lane dims to multiples of 128."""
    w1, b1, w2, b2, w3, b3 = params
    out_dim = w3.shape[1]
    h2_pad = _round_up(HIDDEN2, LANE)          # 64  -> 128
    out_pad = _round_up(out_dim, LANE)         # e.g. 10 -> 128

    w2p = jnp.pad(w2, ((0, 0), (0, h2_pad - HIDDEN2)))
    b2p = jnp.pad(b2, ((0, 0), (0, h2_pad - HIDDEN2)))
    w3p = jnp.pad(w3, ((0, h2_pad - HIDDEN2), (0, out_pad - out_dim)))
    b3p = jnp.pad(b3, ((0, 0), (0, out_pad - out_dim)))

    packed = (
        w1.astype(jnp.bfloat16), b1.astype(jnp.float32),
        w2p.astype(jnp.bfloat16), b2p.astype(jnp.float32),
        w3p.astype(jnp.bfloat16), b3p.astype(jnp.float32),
    )
    return packed, out_dim


def _choose_tile_b(B, tile_b_max):
    """Multiple-of-8 batch tile aiming for >= ~8 grid steps of >= 256 rows."""
    tile_b_max = max(8, _round_up(int(tile_b_max), 8))
    per_step = _round_up(max(pl.cdiv(B, 8), 1), 8)   # ~8 steps over the batch
    tile_b = max(256, per_step)                      # but keep steps >= 256 rows
    tile_b = min(tile_b, tile_b_max)
    tile_b = min(tile_b, _round_up(B, 8))            # never exceed padded batch
    return max(tile_b, 8)


def dummy_net_forward(x, params, *, tile_b=2048):
    """x: (B, *feature_dims). Returns logits of shape (B, output_size), f32."""
    B = x.shape[0]
    x2d = x.reshape(B, -1)                      # out.view(out.shape[0], -1)
    in_dim = x2d.shape[1]

    (w1, b1, w2, b2, w3, b3), out_dim = _pack_params(params)
    h2_pad = w2.shape[1]
    out_pad = w3.shape[1]

    tile_b = _choose_tile_b(B, tile_b)
    B_pad = _round_up(B, tile_b)
    if B_pad != B:
        x2d = jnp.pad(x2d, ((0, B_pad - B), (0, 0)))
    # x stays f32 here; the bf16 cast happens inside the kernel.

    grid = (B_pad // tile_b,)

    # Weights/biases: constant index_map -> stay resident in VMEM across steps.
    resident = lambda arr: pl.BlockSpec(arr.shape, lambda i: (0,) * arr.ndim)

    weight_bytes = (in_dim * HIDDEN1 + HIDDEN1 * h2_pad + h2_pad * out_pad) * 2
    bias_bytes = (HIDDEN1 + h2_pad + out_pad) * 4
    flops = 2 * B_pad * (in_dim * HIDDEN1 + HIDDEN1 * h2_pad + h2_pad * out_pad)
    bytes_accessed = (B_pad * in_dim * 4 + B_pad * out_dim * 4
                      + weight_bytes + bias_bytes)

    vmem_bytes = (2 * tile_b * in_dim * 4        # x tile, double-buffered (f32)
                  + 2 * tile_b * out_dim * 4     # out tile, double-buffered (f32)
                  + 2 * (weight_bytes + bias_bytes)
                  + 4 * tile_b * HIDDEN1 * 4)    # intermediates headroom
    vmem_limit = int(min(max(2 * vmem_bytes, 16 * 1024 * 1024), 48 * 1024 * 1024))

    out = pl.pallas_call(
        _mlp_kernel,
        out_shape=jax.ShapeDtypeStruct((B_pad, out_dim), jnp.float32),
        grid=grid,
        in_specs=[
            pl.BlockSpec((tile_b, in_dim), lambda i: (i, 0)),   # x tile (f32)
            resident(w1), resident(b1),
            resident(w2), resident(b2),
            resident(w3), resident(b3),
        ],
        out_specs=pl.BlockSpec((tile_b, out_dim), lambda i: (i, 0)),
        compiler_params=pltpu.CompilerParams(
            dimension_semantics=("parallel",),
            vmem_limit_bytes=vmem_limit),
        cost_estimate=pl.CostEstimate(
            flops=flops, transcendentals=0, bytes_accessed=bytes_accessed),
    )(x2d, w1, b1, w2, b2, w3, b3)

    if B_pad != B:
        out = out[:B]
    return out


def init_params(key, input_size, output_size):
    """Deterministic init mimicking PyTorch Linear default (U[-1/sqrt(fan_in), +])."""
    def linear(k, fan_in, fan_out):
        kw, kb = jax.random.split(k)
        bound = 1.0 / jnp.sqrt(jnp.float32(fan_in))
        w = jax.random.uniform(kw, (fan_in, fan_out), jnp.float32, -bound, bound)
        b = jax.random.uniform(kb, (1, fan_out), jnp.float32, -bound, bound)
        return w, b

    k1, k2, k3 = jax.random.split(key, 3)
    w1, b1 = linear(k1, input_size, HIDDEN1)
    w2, b2 = linear(k2, HIDDEN1, HIDDEN2)
    w3, b3 = linear(k3, HIDDEN2, output_size)
    return (w1, b1, w2, b2, w3, b3)


def _reference_forward(x, params):
    w1, b1, w2, b2, w3, b3 = params
    h = x.reshape(x.shape[0], -1).astype(jnp.float32)
    h = jnp.maximum(h @ w1 + b1, 0.0)
    h = jnp.maximum(h @ w2 + b2, 0.0)
    return h @ w3 + b3


if __name__ == "__main__":
    # Small shapes consistent with a flattened time-series input:
    # batch=8, input_size=64 (e.g. univariate series of length 64), 10 classes.
    batch, input_size, output_size = 8, 64, 10

    key = jax.random.PRNGKey(0)
    kx, kp = jax.random.split(key)
    x = jax.random.normal(kx, (batch, 1, input_size), jnp.float32)  # (B, C, T)
    params = init_params(kp, input_size, output_size)

    out = dummy_net_forward(x, params)
    out = jax.block_until_ready(out)

    ref = _reference_forward(x, params)
    assert out.shape == (batch, output_size)
    # bf16 MXU inputs with f32 accumulation vs pure-f32 reference.
    assert jnp.allclose(out, ref, atol=2e-2, rtol=2e-2), (
        float(jnp.max(jnp.abs(out - ref))))

    print("KERNEL_OK")
</pallas_src>

<mosaic_0001>
module attributes {stable_mosaic.version = 11 : i64} {
  func.func @_mlp_kernel(%arg0: i32, %arg1: memref<8x64xf32, #tpu.memory_space<vmem>>, %arg2: memref<64x128xbf16, #tpu.memory_space<vmem>>, %arg3: memref<1x128xf32, #tpu.memory_space<vmem>>, %arg4: memref<128x128xbf16, #tpu.memory_space<vmem>>, %arg5: memref<1x128xf32, #tpu.memory_space<vmem>>, %arg6: memref<128x128xbf16, #tpu.memory_space<vmem>>, %arg7: memref<1x128xf32, #tpu.memory_space<vmem>>, %arg8: memref<8x10xf32, #tpu.memory_space<vmem>>) attributes {dimension_semantics = [#tpu.dimension_semantics<parallel>], iteration_bounds = array<i64: 1>, scalar_prefetch = 0 : i64, scratch_operands = 0 : i64, tpu.core_type = #tpu.core_type<tc>, window_params = [{transform_indices = @transform_0, window_bounds = array<i64: 8, 64>}, {pipeline_mode = #tpu.pipeline_mode<synchronous>, transform_indices = @transform_1, window_bounds = array<i64: 64, 128>}, {pipeline_mode = #tpu.pipeline_mode<synchronous>, transform_indices = @transform_2, window_bounds = array<i64: 1, 128>}, {pipeline_mode = #tpu.pipeline_mode<synchronous>, transform_indices = @transform_3, window_bounds = array<i64: 128, 128>}, {pipeline_mode = #tpu.pipeline_mode<synchronous>, transform_indices = @transform_4, window_bounds = array<i64: 1, 128>}, {pipeline_mode = #tpu.pipeline_mode<synchronous>, transform_indices = @transform_5, window_bounds = array<i64: 128, 128>}, {pipeline_mode = #tpu.pipeline_mode<synchronous>, transform_indices = @transform_6, window_bounds = array<i64: 1, 128>}, {transform_indices = @transform_7, window_bounds = array<i64: 8, 10>}]} {
    %c0 = arith.constant 0 : index
    %c0_0 = arith.constant 0 : index
    %0 = vector.load %arg1[%c0, %c0_0] : memref<8x64xf32, #tpu.memory_space<vmem>>, vector<8x64xf32>
    %1 = arith.truncf %0 : vector<8x64xf32> to vector<8x64xbf16>
    %c0_1 = arith.constant 0 : index
    %c0_2 = arith.constant 0 : index
    %2 = vector.load %arg3[%c0_1, %c0_2] : memref<1x128xf32, #tpu.memory_space<vmem>>, vector<1x128xf32>
    %c0_3 = arith.constant 0 : index
    %c0_4 = arith.constant 0 : index
    %3 = vector.load %arg5[%c0_3, %c0_4] : memref<1x128xf32, #tpu.memory_space<vmem>>, vector<1x128xf32>
    %c0_5 = arith.constant 0 : index
    %c0_6 = arith.constant 0 : index
    %4 = vector.load %arg7[%c0_5, %c0_6] : memref<1x128xf32, #tpu.memory_space<vmem>>, vector<1x128xf32>
    %c0_7 = arith.constant 0 : index
    %c0_8 = arith.constant 0 : index
    %5 = vector.load %arg2[%c0_7, %c0_8] : memref<64x128xbf16, #tpu.memory_space<vmem>>, vector<64x128xbf16>
    %cst = arith.constant dense<0.000000e+00> : vector<8x128xf32>
    %6 = tpu.matmul %1, %5, %cst {dimension_numbers = #tpu.dot_dimension_numbers<[1], [0], [0], [1], [0, 0, 1, 1], [], []>} : vector<8x64xbf16>, vector<64x128xbf16>, vector<8x128xf32> -> vector<8x128xf32>
    %7 = vector.broadcast %2 : vector<1x128xf32> to vector<8x128xf32>
    %8 = arith.addf %6, %7 : vector<8x128xf32>
    %cst_9 = arith.constant 0.000000e+00 : f32
    %9 = vector.broadcast %cst_9 : f32 to vector<8x128xf32>
    %10 = arith.maximumf %8, %9 : vector<8x128xf32>
    %11 = arith.truncf %10 : vector<8x128xf32> to vector<8x128xbf16>
    %c0_10 = arith.constant 0 : index
    %c0_11 = arith.constant 0 : index
    %12 = vector.load %arg4[%c0_10, %c0_11] : memref<128x128xbf16, #tpu.memory_space<vmem>>, vector<128x128xbf16>
    %cst_12 = arith.constant dense<0.000000e+00> : vector<8x128xf32>
    %13 = tpu.matmul %11, %12, %cst_12 {dimension_numbers = #tpu.dot_dimension_numbers<[1], [0], [0], [1], [0, 0, 1, 1], [], []>} : vector<8x128xbf16>, vector<128x128xbf16>, vector<8x128xf32> -> vector<8x128xf32>
    %14 = vector.broadcast %3 : vector<1x128xf32> to vector<8x128xf32>
    %15 = arith.addf %13, %14 : vector<8x128xf32>
    %cst_13 = arith.constant 0.000000e+00 : f32
    %16 = vector.broadcast %cst_13 : f32 to vector<8x128xf32>
    %17 = arith.maximumf %15, %16 : vector<8x128xf32>
    %18 = arith.truncf %17 : vector<8x128xf32> to vector<8x128xbf16>
    %c0_14 = arith.constant 0 : index
    %c0_15 = arith.constant 0 : index
    %19 = vector.load %arg6[%c0_14, %c0_15] : memref<128x128xbf16, #tpu.memory_space<vmem>>, vector<128x128xbf16>
    %cst_16 = arith.constant dense<0.000000e+00> : vector<8x128xf32>
    %20 = tpu.matmul %18, %19, %cst_16 {dimension_numbers = #tpu.dot_dimension_numbers<[1], [0], [0], [1], [0, 0, 1, 1], [], []>} : vector<8x128xbf16>, vector<128x128xbf16>, vector<8x128xf32> -> vector<8x128xf32>
    %21 = vector.broadcast %4 : vector<1x128xf32> to vector<8x128xf32>
    %22 = arith.addf %20, %21 : vector<8x128xf32>
    %23 = vector.extract_strided_slice %22 {offsets = [0, 0], sizes = [8, 10], strides = [1, 1]} : vector<8x128xf32> to vector<8x10xf32>
    %c0_17 = arith.constant 0 : index
    %c0_18 = arith.constant 0 : index
    %24 = vector.load %arg8[%c0_17, %c0_18] : memref<8x10xf32, #tpu.memory_space<vmem>>, vector<8x10xf32>
    tpu.vector_store %arg8[%c0_17, %c0_18], %23 {strides = array<i32>} : memref<8x10xf32, #tpu.memory_space<vmem>>, vector<8x10xf32>,
    return
  }
  func.func @transform_0(%arg0: i32) -> (i32, i32) {
    %c0_i32 = arith.constant 0 : i32
    %c0_i32_0 = arith.constant 0 : i32
    return %arg0, %c0_i32 : i32, i32
  }
  func.func @transform_1(%arg0: i32) -> (i32, i32) {
    %c0_i32 = arith.constant 0 : i32
    %c0_i32_0 = arith.constant 0 : i32
    %c0_i32_1 = arith.constant 0 : i32
    return %c0_i32, %c0_i32_0 : i32, i32
  }
  func.func @transform_2(%arg0: i32) -> (i32, i32) {
    %c0_i32 = arith.constant 0 : i32
    %c0_i32_0 = arith.constant 0 : i32
    %c0_i32_1 = arith.constant 0 : i32
    return %c0_i32, %c0_i32_0 : i32, i32
  }
  func.func @transform_3(%arg0: i32) -> (i32, i32) {
    %c0_i32 = arith.constant 0 : i32
    %c0_i32_0 = arith.constant 0 : i32
    %c0_i32_1 = arith.constant 0 : i32
    return %c0_i32, %c0_i32_0 : i32, i32
  }
  func.func @transform_4(%arg0: i32) -> (i32, i32) {
    %c0_i32 = arith.constant 0 : i32
    %c0_i32_0 = arith.constant 0 : i32
    %c0_i32_1 = arith.constant 0 : i32
    return %c0_i32, %c0_i32_0 : i32, i32
  }
  func.func @transform_5(%arg0: i32) -> (i32, i32) {
    %c0_i32 = arith.constant 0 : i32
    %c0_i32_0 = arith.constant 0 : i32
    %c0_i32_1 = arith.constant 0 : i32
    return %c0_i32, %c0_i32_0 : i32, i32
  }
  func.func @transform_6(%arg0: i32) -> (i32, i32) {
    %c0_i32 = arith.constant 0 : i32
    %c0_i32_0 = arith.constant 0 : i32
    %c0_i32_1 = arith.constant 0 : i32
    return %c0_i32, %c0_i32_0 : i32, i32
  }
  func.func @transform_7(%arg0: i32) -> (i32, i32) {
    %c0_i32 = arith.constant 0 : i32
    %c0_i32_0 = arith.constant 0 : i32
    return %arg0, %c0_i32 : i32, i32
  }
}

</mosaic_0001>

<llo_original>
// kernel: tpu_custom_call.1
$region0: #{tpu_custom_call.1}
  #allocation0 [shape = 'u32[]', space=smem, size = 0x4, offset = 0x4, fixed_abs, tag = 'smem constant byte address 0x4 - core index']
  #allocation1 [shape = 'u32[144,128]{1,0:T(1,128)}', space=vmem, size = 0x12000, scoped, tag = 'internal scratch']
  %s0 = inlined_call_operand.hbm [shape: f32[8,64], index: 0, kind: input, shape index: {}]
  %s1 = inlined_call_operand.hbm [shape: bf16[64,128], index: 1, kind: input, shape index: {}]
  %s2 = inlined_call_operand.vmem [shape: f32[1,128], index: 2, kind: input, shape index: {}]
  %s3 = inlined_call_operand.hbm [shape: bf16[128,128], index: 3, kind: input, shape index: {}]
  %s4 = inlined_call_operand.vmem [shape: f32[1,128], index: 4, kind: input, shape index: {}]
  %s5 = inlined_call_operand.hbm [shape: bf16[128,128], index: 5, kind: input, shape index: {}]
  %s6 = inlined_call_operand.vmem [shape: f32[1,128], index: 6, kind: input, shape index: {}]
  %s7 = inlined_call_operand.hbm [shape: f32[8,10], index: 7, kind: output, shape index: {}]
  %s8 = sld [smem:[#allocation0]]
  $region54: #{tpu_custom_call.1} parent=0
    _
  %s10 = ssub.s32 1, %s8
  %s11 = scalar_select 0, %s10, %s8
  $region1: #{tpu_custom_call.1} parent=0
    #allocation2 [shape = 'u8[4096]{0}', space=vmem, size = 0x1000, scoped, tag = 'input window, operand 0, single buffered']
    #allocation3 [shape = 's32[1]{0}', space=sflag, size = 0x4, scoped, tag = 'scoped memory for tpu_custom_call.1']
    #allocation4 [shape = 's32[1]{0}', space=sflag, size = 0x4, scoped, tag = 'scoped memory for tpu_custom_call.1']
    #allocation5 [shape = 'u8[16384]{0}', space=vmem, size = 0x4000, scoped, tag = 'input window, operand 1, single buffered']
    #allocation6 [shape = 's32[1]{0}', space=sflag, size = 0x4, scoped, tag = 'scoped memory for tpu_custom_call.1']
    #allocation7 [shape = 'u8[32768]{0}', space=vmem, size = 0x8000, scoped, tag = 'input window, operand 3, single buffered']
    #allocation8 [shape = 'u8[32768]{0}', space=vmem, size = 0x8000, scoped, tag = 'input window, operand 5, single buffered']
    #allocation9 [shape = 's32[1]{0}', space=sflag, size = 0x4, scoped, tag = 'scoped memory for tpu_custom_call.1']
    #allocation10 [shape = 'u8[4096]{0}', space=vmem, size = 0x1000, scoped, tag = 'output window, operand 0, single buffered']
    %12 = vsyncpa [#allocation3], 0
    %13 = vsyncpa [#allocation6], 0
    %14 = vsyncpa [#allocation9], 0
    %15 = vsyncpa [#allocation4], 0
    // Predicated region
    $region2: #{tpu_custom_call.1} parent=1 // pred_check
      _
    $region3: #{tpu_custom_call.1} parent=1 // pred_check_branch
      %17 = sbr.rel (0) target = $region5
    $region4: #{tpu_custom_call.1} parent=1 // pred_region
      %s19 = ssub.s32 128, 128
      %20 = vsyncadd [#allocation3], %s19
      %s22 = sshll.u32 [#allocation2], 4
      %s23 = int_to_ptr.vmem [resolvable:$true] %s22
      %25 = dma.hbm_to_vmem [thread:$0]  %s0, 128, %s23, [#allocation3]
    $region5: #{tpu_custom_call.1} parent=1 // pred_fallthru
      _
    // Predicated region
    $region6: #{tpu_custom_call.1} parent=1 // pred_check
      _
    $region7: #{tpu_custom_call.1} parent=1 // pred_check_branch
      %27 = sbr.rel (0) target = $region9
    $region8: #{tpu_custom_call.1} parent=1 // pred_region
      %s29 = ssub.s32 512, 512
      %30 = vsyncadd [#allocation6], %s29
      %s31 = sshll.u32 [#allocation5], 4
      %s32 = int_to_ptr.vmem [resolvable:$true] %s31
      %37 = dma.hbm_to_vmem [thread:$0]  %s1, 512, %s32, [#allocation6], 64, 64, 4
    $region9: #{tpu_custom_call.1} parent=1 // pred_fallthru
      _
    // Predicated region
    $region10: #{tpu_custom_call.1} parent=1 // pred_check
      _
    $region11: #{tpu_custom_call.1} parent=1 // pred_check_branch
      %39 = sbr.rel (0) target = $region13
    $region12: #{tpu_custom_call.1} parent=1 // pred_region
      _
    $region13: #{tpu_custom_call.1} parent=1 // pred_fallthru
      _
    // Predicated region
    $region14: #{tpu_custom_call.1} parent=1 // pred_check
      _
    $region15: #{tpu_custom_call.1} parent=1 // pred_check_branch
      %41 = sbr.rel (0) target = $region17
    $region16: #{tpu_custom_call.1} parent=1 // pred_region
      %s43 = ssub.s32 1024, 1024
      %44 = vsyncadd [#allocation6], %s43
      %s45 = sshll.u32 [#allocation7], 4
      %s46 = int_to_ptr.vmem [resolvable:$true] %s45
      %51 = dma.hbm_to_vmem [thread:$0]  %s3, 1024, %s46, [#allocation6], 64, 64, 4
    $region17: #{tpu_custom_call.1} parent=1 // pred_fallthru
      _
    // Predicated region
    $region18: #{tpu_custom_call.1} parent=1 // pred_check
      _
    $region19: #{tpu_custom_call.1} parent=1 // pred_check_branch
      %53 = sbr.rel (0) target = $region21
    $region20: #{tpu_custom_call.1} parent=1 // pred_region
      _
    $region21: #{tpu_custom_call.1} parent=1 // pred_fallthru
      _
    // Predicated region
    $region22: #{tpu_custom_call.1} parent=1 // pred_check
      _
    $region23: #{tpu_custom_call.1} parent=1 // pred_check_branch
      %55 = sbr.rel (0) target = $region25
    $region24: #{tpu_custom_call.1} parent=1 // pred_region
      %s57 = ssub.s32 1024, 1024
      %58 = vsyncadd [#allocation9], %s57
      %s59 = sshll.u32 [#allocation8], 4
      %s60 = int_to_ptr.vmem [resolvable:$true] %s59
      %65 = dma.hbm_to_vmem [thread:$0]  %s5, 1024, %s60, [#allocation9], 64, 64, 4
    $region25: #{tpu_custom_call.1} parent=1 // pred_fallthru
      _
    // Predicated region
    $region26: #{tpu_custom_call.1} parent=1 // pred_check
      _
    $region27: #{tpu_custom_call.1} parent=1 // pred_check_branch
      %67 = sbr.rel (0) target = $region29
    $region28: #{tpu_custom_call.1} parent=1 // pred_region
      _
    $region29: #{tpu_custom_call.1} parent=1 // pred_fallthru
      _
    // Predicated region
    $region30: #{tpu_custom_call.1} parent=1 // pred_check
      _
    $region31: #{tpu_custom_call.1} parent=1 // pred_check_branch
      %69 = sbr.rel (0) target = $region33
    $region32: #{tpu_custom_call.1} parent=1 // pred_region
      %70 = dma.done [#allocation3], 128
    $region33: #{tpu_custom_call.1} parent=1 // pred_fallthru
      _
    // Predicated region
    $region34: #{tpu_custom_call.1} parent=1 // pred_check
      _
    $region35: #{tpu_custom_call.1} parent=1 // pred_check_branch
      %72 = sbr.rel (0) target = $region37
    $region36: #{tpu_custom_call.1} parent=1 // pred_region
      %73 = dma.done [#allocation6], 512
    $region37: #{tpu_custom_call.1} parent=1 // pred_fallthru
      _
    // Predicated region
    $region38: #{tpu_custom_call.1} parent=1 // pred_check
      _
    $region39: #{tpu_custom_call.1} parent=1 // pred_check_branch
      %75 = sbr.rel (0) target = $region41
    $region40: #{tpu_custom_call.1} parent=1 // pred_region
      %76 = dma.done [#allocation6], 1024
    $region41: #{tpu_custom_call.1} parent=1 // pred_fallthru
      _
    // Predicated region
    $region42: #{tpu_custom_call.1} parent=1 // pred_check
      _
    $region43: #{tpu_custom_call.1} parent=1 // pred_check_branch
      %78 = sbr.rel (0) target = $region45
    $region44: #{tpu_custom_call.1} parent=1 // pred_region
      %79 = dma.done [#allocation9], 1024
    $region45: #{tpu_custom_call.1} parent=1 // pred_fallthru
      _
    %v81 = vld [vmem:[#allocation2] sm:$0xff]
    %v82 = vpack.c.bf16 %v81, %v81
    %v83 = vld [vmem:[%s2] sm:$0x1]
    %v84 = vld [vmem:[%s4] sm:$0x1]
    %v85 = vld [vmem:[%s6] sm:$0x1]
    %v86 = vld [vmem:[#allocation5] sm:$0xf]
    %v87 = vld [vmem:[#allocation5 + $0x4] sm:$0xf]
    %v88 = vld [vmem:[#allocation5 + $0x8] sm:$0xf]
    %v89 = vld [vmem:[#allocation5 + $0xc] sm:$0xf]
    %v90 = vld [vmem:[#allocation5 + $0x10] sm:$0xf]
    %v91 = vld [vmem:[#allocation5 + $0x14] sm:$0xf]
    %v92 = vld [vmem:[#allocation5 + $0x18] sm:$0xf]
    %v93 = vld [vmem:[#allocation5 + $0x1c] sm:$0xf]
    %v95 = vlaneseq
    %v96 = vshrl.u32 %v95, 7
    %v97 = vsub.s32 0, %v96
    %v98 = vrot.slane %v83, %v97
    %v108 = vunpack.c.l.b16 %v86
    %v109 = vunpack.c.l.b16 %v87
    %v110 = vunpack.c.l.b16 %v88
    %v111 = vunpack.c.l.b16 %v89
    %v112 = vunpack.c.l.b16 %v90
    %v113 = vunpack.c.l.b16 %v91
    %v114 = vunpack.c.l.b16 %v92
    %v115 = vunpack.c.l.b16 %v93
    %v116 = vpack.c.b16 %v109, %v108
    %v117 = vpack.c.b16 %v111, %v110
    %v118 = vpack.c.b16 %v113, %v112
    %v119 = vpack.c.b16 %v115, %v114
    %vm124 = vcmask 523264
    %v126 = vsel %vm124, %v82, 0
    %128 = vmatprep.subr.bf16.mxu0 0
    %129 = vmatpush1.bf16.msra.mxu0 0
    %130 = vmatprep.subr.bf16.mxu0 0
    %131 = vmatpush1.bf16.msra.mxu0 0
    %132 = vmatprep.subr.bf16.mxu0 0
    %133 = vmatpush1.bf16.msra.mxu0 0
    %134 = vmatprep.subr.bf16.mxu0 0
    %135 = vmatpush1.bf16.msra.mxu0 0
    %136 = vmatprep.subr.bf16.mxu0 0
    %137 = vmatpush1.bf16.msra.mxu0 %v119
    %138 = vmatprep.subr.bf16.mxu0 0
    %139 = vmatpush1.bf16.msra.mxu0 %v118
    %140 = vmatprep.subr.bf16.mxu0 0
    %141 = vmatpush1.bf16.msra.mxu0 %v117
    %142 = vmatprep.subr.bf16.mxu0 0
    %143 = vmatpush1.bf16.msra.mxu0 %v116
    %144 = vmatprep.subr.bf16.mxu0 0
    %145 = vmatpush2.bf16.msra.mxu0 0
    %146 = vmatprep.subr.bf16.mxu0 0
    %147 = vmatpush2.bf16.msra.mxu0 0
    %148 = vmatprep.subr.bf16.mxu0 0
    %149 = vmatpush2.bf16.msra.mxu0 0
    %150 = vmatprep.subr.bf16.mxu0 0
    %151 = vmatpush2.bf16.msra.mxu0 0
    %152 = vmatprep.subr.bf16.mxu0 0
    %153 = vmatpush2.bf16.msra.mxu0 0
    %154 = vmatprep.subr.bf16.mxu0 0
    %155 = vmatpush2.bf16.msra.mxu0 0
    %156 = vmatprep.subr.bf16.mxu0 0
    %157 = vmatpush2.bf16.msra.mxu0 0
    %158 = vmatprep.subr.bf16.mxu0 0
    %159 = vmatpush2.bf16.msra.mxu0 0
    %160 = vmatprep.mubr.bf16.mxu0 0
    %161 = vmatmul.mubr.bf16.gmra.mxu0 %v126
    %v162 = vpop.f32.mrf.mxu0
    %v163 = vadd.f32 %v98, %v162
    %v164 = vpop.f32.mrf.mxu0
    %v165 = vpop.f32.mrf.mxu0
    %v166 = vpop.f32.mrf.mxu0
    %167 = vdwg.mxu0
    %v168 = vmax.f32 %v163, 0.0
    %v169 = vpack.c.bf16 %v168, %v168
    %v170 = vld [vmem:[#allocation7] sm:$0xf]
    %v171 = vld [vmem:[#allocation7 + $0x4] sm:$0xf]
    %v172 = vld [vmem:[#allocation7 + $0x8] sm:$0xf]
    %v173 = vld [vmem:[#allocation7 + $0xc] sm:$0xf]
    %v174 = vld [vmem:[#allocation7 + $0x10] sm:$0xf]
    %v175 = vld [vmem:[#allocation7 + $0x14] sm:$0xf]
    %v176 = vld [vmem:[#allocation7 + $0x18] sm:$0xf]
    %v177 = vld [vmem:[#allocation7 + $0x1c] sm:$0xf]
    %v178 = vld [vmem:[#allocation7 + $0x20] sm:$0xf]
    %v179 = vld [vmem:[#allocation7 + $0x24] sm:$0xf]
    %v180 = vld [vmem:[#allocation7 + $0x28] sm:$0xf]
    %v181 = vld [vmem:[#allocation7 + $0x2c] sm:$0xf]
    %v182 = vld [vmem:[#allocation7 + $0x30] sm:$0xf]
    %v183 = vld [vmem:[#allocation7 + $0x34] sm:$0xf]
    %v184 = vld [vmem:[#allocation7 + $0x38] sm:$0xf]
    %v185 = vld [vmem:[#allocation7 + $0x3c] sm:$0xf]
    %v187 = vlaneseq
    %v188 = vshrl.u32 %v187, 7
    %v189 = vsub.s32 0, %v188
    %v190 = vrot.slane %v84, %v189
    %v208 = vunpack.c.l.b16 %v170
    %v209 = vunpack.c.l.b16 %v171
    %v210 = vunpack.c.l.b16 %v172
    %v211 = vunpack.c.l.b16 %v173
    %v212 = vunpack.c.l.b16 %v174
    %v213 = vunpack.c.l.b16 %v175
    %v214 = vunpack.c.l.b16 %v176
    %v215 = vunpack.c.l.b16 %v177
    %v216 = vunpack.c.l.b16 %v178
    %v217 = vunpack.c.l.b16 %v179
    %v218 = vunpack.c.l.b16 %v180
    %v219 = vunpack.c.l.b16 %v181
    %v220 = vunpack.c.l.b16 %v182
    %v221 = vunpack.c.l.b16 %v183
    %v222 = vunpack.c.l.b16 %v184
    %v223 = vunpack.c.l.b16 %v185
    %v224 = vpack.c.b16 %v209, %v208
    %v225 = vpack.c.b16 %v211, %v210
    %v226 = vpack.c.b16 %v213, %v212
    %v227 = vpack.c.b16 %v215, %v214
    %v228 = vpack.c.b16 %v217, %v216
    %v229 = vpack.c.b16 %v219, %v218
    %v230 = vpack.c.b16 %v221, %v220
    %v231 = vpack.c.b16 %v223, %v222
    %240 = vmatprep.subr.bf16.mxu0 0
    %241 = vmatpush1.bf16.msra.mxu0 %v231
    %242 = vmatprep.subr.bf16.mxu0 0
    %243 = vmatpush1.bf16.msra.mxu0 %v230
    %244 = vmatprep.subr.bf16.mxu0 0
    %245 = vmatpush1.bf16.msra.mxu0 %v229
    %246 = vmatprep.subr.bf16.mxu0 0
    %247 = vmatpush1.bf16.msra.mxu0 %v228
    %248 = vmatprep.subr.bf16.mxu0 0
    %249 = vmatpush1.bf16.msra.mxu0 %v227
    %250 = vmatprep.subr.bf16.mxu0 0
    %251 = vmatpush1.bf16.msra.mxu0 %v226
    %252 = vmatprep.subr.bf16.mxu0 0
    %253 = vmatpush1.bf16.msra.mxu0 %v225
    %254 = vmatprep.subr.bf16.mxu0 0
    %255 = vmatpush1.bf16.msra.mxu0 %v224
    %256 = vmatprep.subr.bf16.mxu0 0
    %257 = vmatpush2.bf16.msra.mxu0 0
    %258 = vmatprep.subr.bf16.mxu0 0
    %259 = vmatpush2.bf16.msra.mxu0 0
    %260 = vmatprep.subr.bf16.mxu0 0
    %261 = vmatpush2.bf16.msra.mxu0 0
    %262 = vmatprep.subr.bf16.mxu0 0
    %263 = vmatpush2.bf16.msra.mxu0 0
    %264 = vmatprep.subr.bf16.mxu0 0
    %265 = vmatpush2.bf16.msra.mxu0 0
    %266 = vmatprep.subr.bf16.mxu0 0
    %267 = vmatpush2.bf16.msra.mxu0 0
    %268 = vmatprep.subr.bf16.mxu0 0
    %269 = vmatpush2.bf16.msra.mxu0 0
    %270 = vmatprep.subr.bf16.mxu0 0
    %271 = vmatpush2.bf16.msra.mxu0 0
    %272 = vmatprep.mubr.bf16.mxu0 0
    %273 = vmatmul.mubr.bf16.gmra.mxu0 %v169
    %v274 = vpop.f32.mrf.mxu0
    %v275 = vadd.f32 %v190, %v274
    %v276 = vpop.f32.mrf.mxu0
    %v277 = vpop.f32.mrf.mxu0
    %v278 = vpop.f32.mrf.mxu0
    %279 = vdwg.mxu0
    %v280 = vmax.f32 %v275, 0.0
    %v281 = vpack.c.bf16 %v280, %v280
    %v282 = vld [vmem:[#allocation8] sm:$0xf]
    %v283 = vld [vmem:[#allocation8 + $0x4] sm:$0xf]
    %v284 = vld [vmem:[#allocation8 + $0x8] sm:$0xf]
    %v285 = vld [vmem:[#allocation8 + $0xc] sm:$0xf]
    %v286 = vld [vmem:[#allocation8 + $0x10] sm:$0xf]
    %v287 = vld [vmem:[#allocation8 + $0x14] sm:$0xf]
    %v288 = vld [vmem:[#allocation8 + $0x18] sm:$0xf]
    %v289 = vld [vmem:[#allocation8 + $0x1c] sm:$0xf]
    %v290 = vld [vmem:[#allocation8 + $0x20] sm:$0xf]
    %v291 = vld [vmem:[#allocation8 + $0x24] sm:$0xf]
    %v292 = vld [vmem:[#allocation8 + $0x28] sm:$0xf]
    %v293 = vld [vmem:[#allocation8 + $0x2c] sm:$0xf]
    %v294 = vld [vmem:[#allocation8 + $0x30] sm:$0xf]
    %v295 = vld [vmem:[#allocation8 + $0x34] sm:$0xf]
    %v296 = vld [vmem:[#allocation8 + $0x38] sm:$0xf]
    %v297 = vld [vmem:[#allocation8 + $0x3c] sm:$0xf]
    %v299 = vlaneseq
    %v300 = vshrl.u32 %v299, 7
    %v301 = vsub.s32 0, %v300
    %v302 = vrot.slane %v85, %v301
    %v320 = vunpack.c.l.b16 %v282
    %v321 = vunpack.c.l.b16 %v283
    %v322 = vunpack.c.l.b16 %v284
    %v323 = vunpack.c.l.b16 %v285
    %v324 = vunpack.c.l.b16 %v286
    %v325 = vunpack.c.l.b16 %v287
    %v326 = vunpack.c.l.b16 %v288
    %v327 = vunpack.c.l.b16 %v289
    %v328 = vunpack.c.l.b16 %v290
    %v329 = vunpack.c.l.b16 %v291
    %v330 = vunpack.c.l.b16 %v292
    %v331 = vunpack.c.l.b16 %v293
    %v332 = vunpack.c.l.b16 %v294
    %v333 = vunpack.c.l.b16 %v295
    %v334 = vunpack.c.l.b16 %v296
    %v335 = vunpack.c.l.b16 %v297
    %v336 = vpack.c.b16 %v321, %v320
    %v337 = vpack.c.b16 %v323, %v322
    %v338 = vpack.c.b16 %v325, %v324
    %v339 = vpack.c.b16 %v327, %v326
    %v340 = vpack.c.b16 %v329, %v328
    %v341 = vpack.c.b16 %v331, %v330
    %v342 = vpack.c.b16 %v333, %v332
    %v343 = vpack.c.b16 %v335, %v334
    %352 = vmatprep.subr.bf16.mxu0 0
    %353 = vmatpush1.bf16.msra.mxu0 %v343
    %354 = vmatprep.subr.bf16.mxu0 0
    %355 = vmatpush1.bf16.msra.mxu0 %v342
    %356 = vmatprep.subr.bf16.mxu0 0
    %357 = vmatpush1.bf16.msra.mxu0 %v341
    %358 = vmatprep.subr.bf16.mxu0 0
    %359 = vmatpush1.bf16.msra.mxu0 %v340
    %360 = vmatprep.subr.bf16.mxu0 0
    %361 = vmatpush1.bf16.msra.mxu0 %v339
    %362 = vmatprep.subr.bf16.mxu0 0
    %363 = vmatpush1.bf16.msra.mxu0 %v338
    %364 = vmatprep.subr.bf16.mxu0 0
    %365 = vmatpush1.bf16.msra.mxu0 %v337
    %366 = vmatprep.subr.bf16.mxu0 0
    %367 = vmatpush1.bf16.msra.mxu0 %v336
    %368 = vmatprep.subr.bf16.mxu0 0
    %369 = vmatpush2.bf16.msra.mxu0 0
    %370 = vmatprep.subr.bf16.mxu0 0
    %371 = vmatpush2.bf16.msra.mxu0 0
    %372 = vmatprep.subr.bf16.mxu0 0
    %373 = vmatpush2.bf16.msra.mxu0 0
    %374 = vmatprep.subr.bf16.mxu0 0
    %375 = vmatpush2.bf16.msra.mxu0 0
    %376 = vmatprep.subr.bf16.mxu0 0
    %377 = vmatpush2.bf16.msra.mxu0 0
    %378 = vmatprep.subr.bf16.mxu0 0
    %379 = vmatpush2.bf16.msra.mxu0 0
    %380 = vmatprep.subr.bf16.mxu0 0
    %381 = vmatpush2.bf16.msra.mxu0 0
    %382 = vmatprep.subr.bf16.mxu0 0
    %383 = vmatpush2.bf16.msra.mxu0 0
    %384 = vmatprep.mubr.bf16.mxu0 0
    %385 = vmatmul.mubr.bf16.gmra.mxu0 %v281
    %v386 = vpop.f32.mrf.mxu0
    %v387 = vadd.f32 %v302, %v386
    %v388 = vpop.f32.mrf.mxu0
    %v389 = vpop.f32.mrf.mxu0
    %v390 = vpop.f32.mrf.mxu0
    %391 = vdwg.mxu0
    %vm392 = vcmask 80896
    %393 = vst.msk [vmem:[#allocation10] sm:$0xff] %vm392, %v387
    // Predicated region
    $region46: #{tpu_custom_call.1} parent=1 // pred_check
      _
    $region47: #{tpu_custom_call.1} parent=1 // pred_check_branch
      %395 = sbr.rel (0) target = $region49
    $region48: #{tpu_custom_call.1} parent=1 // pred_region
      %s397 = ssub.s32 128, 128
      %398 = vsyncadd [#allocation4], %s397
      %s400 = sshll.u32 [#allocation10], 4
      %s401 = int_to_ptr.vmem [resolvable:$true] %s400
      %403 = dma.vmem_to_hbm [thread:$0]  %s401, 128, %s7, [#allocation4]
    $region49: #{tpu_custom_call.1} parent=1 // pred_fallthru
      _
    // Predicated region
    $region50: #{tpu_custom_call.1} parent=1 // pred_check
      _
    $region51: #{tpu_custom_call.1} parent=1 // pred_check_branch
      %405 = sbr.rel (0) target = $region53
    $region52: #{tpu_custom_call.1} parent=1 // pred_region
      %406 = dma.done [#allocation4], 128
    $region53: #{tpu_custom_call.1} parent=1 // pred_fallthru
      _
    %407 = vsyncpa [#allocation3], 1
    %408 = vsyncpa [#allocation6], 1
    %409 = vsyncpa [#allocation9], 1
    %410 = vsyncpa [#allocation4], 1

</llo_original>
